<compile_context>
chip_gen: v7x
topology: tpu7x:2x2x1
jax: 0.10.0
libtpu: 0.0.40
codegen_flags: <defaults>
</compile_context>

<pallas_src>
import jax
import jax.numpy as jnp
from jax.experimental import pallas as pl
from jax.experimental.pallas import tpu as pltpu


# ----------------------------------------------------------------------------
# Fused kernel: block-diag dual-LSTM recurrence, mean over time, Linear,
# Sigmoid — one launch, no intermediate HBM traffic.
# ----------------------------------------------------------------------------
def fused_lstm_kernel(x_ref, wih_ref, whh_ref, b_ref, lw_ref, lb_ref, o_ref):
    TB, _ = x_ref.shape                 # (T*B, 2D), time-major, bf16
    H2 = whh_ref.shape[0]               # 2H (fused state width)
    H6 = 3 * H2                         # sigmoid-gate slab width (i,f,o)
    B = o_ref.shape[0]
    T = TB // B
    inv_T = 1.0 / T                     # static: multiply, not divide

    # Hoisted, time-invariant input projection for BOTH LSTMs at once
    # (block-diag W_ih), bias folded in once. Off the serial path.
    xw = jnp.dot(x_ref[...], wih_ref[...],
                 preferred_element_type=jnp.float32) + b_ref[...]      # (T*B, 8H) f32

    whh = whh_ref[...]                  # (2H, 8H) bf16, loop-invariant MXU RHS

    h = jnp.zeros((B, H2), jnp.float32)
    c = jnp.zeros((B, H2), jnp.float32)
    acc = jnp.zeros((B, H2), jnp.float32)

    # Static unroll over the (short) sequence: only ONE fused h @ W_hh matmul
    # + one sigmoid slab + two tanh's remain on the serial critical path.
    for t in range(T):
        z = xw[t * B:(t + 1) * B, :] + jnp.dot(
            h.astype(whh.dtype), whh, preferred_element_type=jnp.float32)  # (B, 8H)
        # Gate columns pre-permuted host-side to [i1 i2 | f1 f2 | o1 o2 | g1 g2].
        # sigmoid(x) = 0.5*(tanh(0.5*x)+1): single EUP push per slab.
        sig = 0.5 * (jnp.tanh(0.5 * z[:, :H6]) + 1.0)   # (B, 6H): i|f|o
        g_g = jnp.tanh(z[:, H6:])                       # (B, 2H): g
        i_g = sig[:, 0 * H2:1 * H2]
        f_g = sig[:, 1 * H2:2 * H2]
        o_g = sig[:, 2 * H2:3 * H2]
        c = f_g * c + i_g * g_g
        h = o_g * jnp.tanh(c)
        acc = acc + h

    # acc == concat(mean_h1, mean_h2) * T already — no concatenate needed.
    mean_cat = acc * inv_T                                              # (B, 2H)
    logits = jnp.dot(mean_cat, lw_ref[...],
                     preferred_element_type=jnp.float32) + lb_ref[...]  # (B, O)
    o_ref[...] = jax.nn.sigmoid(logits)


def lstm_pair_forward_fused(x_tm, B, wih_blk, whh_blk, b_blk, lw, lb):
    TB, D2 = x_tm.shape
    H8 = whh_blk.shape[1]
    H2 = whh_blk.shape[0]
    O = lw.shape[1]

    def full(shape):
        return pl.BlockSpec(shape, lambda i, _n=len(shape): (0,) * _n)

    return pl.pallas_call(
        fused_lstm_kernel,
        out_shape=jax.ShapeDtypeStruct((B, O), jnp.float32),
        grid=(1,),
        in_specs=[
            full((TB, D2)),       # time-major [x1|x2] embeddings (bf16)
            full((D2, H8)),       # block-diag W_ih, gate-permuted (bf16)
            full((H2, H8)),       # block-diag W_hh, gate-permuted (bf16)
            full((1, H8)),        # fused bias (f32)
            full((H2, O)),        # Linear weight (f32)
            full((1, O)),         # Linear bias (f32)
        ],
        out_specs=full((B, O)),
        compiler_params=pltpu.CompilerParams(
            dimension_semantics=("arbitrary",)),
    )(x_tm, wih_blk, whh_blk, b_blk, lw, lb)


# ----------------------------------------------------------------------------
# Host-side weight packing: block-diag fusion of the two LSTMs + gate-column
# permutation [i1 i2 | f1 f2 | o1 o2 | g1 g2]. Done once, off the hot path.
# Per-LSTM weights use PyTorch gate order [i f g o] along the 4H axis.
# ----------------------------------------------------------------------------
def pack_lstm_pair(wih1, whh1, b1, wih2, whh2, b2, hidden_size):
    H = hidden_size

    def gate(w, k):
        return w[:, k * H:(k + 1) * H]

    def pack_blockdiag(w1, w2):
        r1, r2 = w1.shape[0], w2.shape[0]
        z1 = jnp.zeros((r1, H), w1.dtype)
        z2 = jnp.zeros((r2, H), w2.dtype)

        def blk(k):  # (r1+r2, 2H) block-diag columns for gate k: [g_k^1 | g_k^2]
            top = jnp.concatenate([gate(w1, k), z1], axis=1)
            bot = jnp.concatenate([z2, gate(w2, k)], axis=1)
            return jnp.concatenate([top, bot], axis=0)

        # gate order i(0), f(1), o(3), g(2)  ->  sigmoid gates contiguous first
        return jnp.concatenate([blk(0), blk(1), blk(3), blk(2)], axis=1)

    def pack_bias(bb1, bb2):
        return jnp.concatenate(
            [gate(bb1, 0), gate(bb2, 0),
             gate(bb1, 1), gate(bb2, 1),
             gate(bb1, 3), gate(bb2, 3),
             gate(bb1, 2), gate(bb2, 2)], axis=1)

    return pack_blockdiag(wih1, wih2), pack_blockdiag(whh1, whh2), pack_bias(b1, b2)


# ----------------------------------------------------------------------------
# Parameter init (deterministic, PyTorch-style scales) + forward glue.
# ----------------------------------------------------------------------------
def init_params(key, vocab_size, input_size, hidden_size, output_size):
    ks = jax.random.split(key, 11)
    H = hidden_size
    H4 = 4 * H
    s_lstm = 1.0 / jnp.sqrt(H)            # nn.LSTM init scale
    s_lin = 1.0 / jnp.sqrt(2 * H)         # Linear fan_in = 2H

    def u(k, shape, s):
        return jax.random.uniform(k, shape, jnp.float32, -s, s)

    # Per-LSTM weights stored pre-transposed for x @ W_ih / h @ W_hh,
    # PyTorch gate order i,f,g,o; b = b_ih + b_hh folded.
    wih1 = u(ks[1], (input_size, H4), s_lstm)
    whh1 = u(ks[2], (H, H4), s_lstm)
    b1 = u(ks[3], (1, H4), s_lstm) + u(ks[4], (1, H4), s_lstm)
    wih2 = u(ks[5], (input_size, H4), s_lstm)
    whh2 = u(ks[6], (H, H4), s_lstm)
    b2 = u(ks[7], (1, H4), s_lstm) + u(ks[8], (1, H4), s_lstm)

    wih_blk, whh_blk, b_blk = pack_lstm_pair(wih1, whh1, b1, wih2, whh2, b2, H)

    return dict(
        emb=jax.random.normal(ks[0], (vocab_size, input_size), jnp.float32),
        wih_blk=wih_blk.astype(jnp.bfloat16),   # MXU-native operands
        whh_blk=whh_blk.astype(jnp.bfloat16),
        b_blk=b_blk,                            # f32 (added post-matmul)
        lin_w=u(ks[9], (2 * H, output_size), s_lin),
        lin_b=u(ks[10], (1, output_size), s_lin),
    )


def lstm_forward(params, sentence1, sentence2):
    # Embedding lookup (glue, plain JAX gather).
    e1 = params["emb"][sentence1]                        # (B, T, D)
    e2 = params["emb"][sentence2]                        # (B, T, D)
    B, T, D = e1.shape
    # Feature-concat for the block-diag W_ih, time-major relayout and bf16
    # cast — all in the XLA wrapper, off the kernel's serial path.
    x_cat = jnp.concatenate([e1, e2], axis=-1)           # (B, T, 2D)
    x_tm = jnp.transpose(x_cat, (1, 0, 2)).reshape(T * B, 2 * D)
    x_tm = x_tm.astype(jnp.bfloat16)                     # (T*B, 2D)
    return lstm_pair_forward_fused(
        x_tm, B,
        params["wih_blk"], params["whh_blk"], params["b_blk"],
        params["lin_w"], params["lin_b"])


if __name__ == "__main__":
    VOCAB, B, T = 50, 2, 8
    INPUT_SIZE, HIDDEN_SIZE, OUTPUT_SIZE = 16, 32, 4

    key = jax.random.PRNGKey(0)
    k_params, k_s1, k_s2 = jax.random.split(key, 3)

    params = init_params(k_params, VOCAB, INPUT_SIZE, HIDDEN_SIZE, OUTPUT_SIZE)
    sentence1 = jax.random.randint(k_s1, (B, T), 0, VOCAB, dtype=jnp.int32)
    sentence2 = jax.random.randint(k_s2, (B, T), 0, VOCAB, dtype=jnp.int32)

    y = lstm_forward(params, sentence1, sentence2)
    jax.block_until_ready(y)

    assert y.shape == (B, OUTPUT_SIZE)
    assert bool(jnp.all((y >= 0.0) & (y <= 1.0)))
    assert bool(jnp.all(jnp.isfinite(y)))
    print("KERNEL_OK")
</pallas_src>

<mosaic_0001>
module attributes {stable_mosaic.version = 11 : i64} {
  func.func @fused_lstm_kernel(%arg0: i32, %arg1: memref<16x32xbf16, #tpu.memory_space<vmem>>, %arg2: memref<32x256xbf16, #tpu.memory_space<vmem>>, %arg3: memref<64x256xbf16, #tpu.memory_space<vmem>>, %arg4: memref<1x256xf32, #tpu.memory_space<vmem>>, %arg5: memref<64x4xf32, #tpu.memory_space<vmem>>, %arg6: memref<1x4xf32, #tpu.memory_space<vmem>>, %arg7: memref<2x4xf32, #tpu.memory_space<vmem>>) attributes {dimension_semantics = [#tpu.dimension_semantics<arbitrary>], iteration_bounds = array<i64: 1>, scalar_prefetch = 0 : i64, scratch_operands = 0 : i64, tpu.core_type = #tpu.core_type<tc>, window_params = [{pipeline_mode = #tpu.pipeline_mode<synchronous>, transform_indices = @transform_0, window_bounds = array<i64: 16, 32>}, {pipeline_mode = #tpu.pipeline_mode<synchronous>, transform_indices = @transform_1, window_bounds = array<i64: 32, 256>}, {pipeline_mode = #tpu.pipeline_mode<synchronous>, transform_indices = @transform_2, window_bounds = array<i64: 64, 256>}, {pipeline_mode = #tpu.pipeline_mode<synchronous>, transform_indices = @transform_3, window_bounds = array<i64: 1, 256>}, {pipeline_mode = #tpu.pipeline_mode<synchronous>, transform_indices = @transform_4, window_bounds = array<i64: 64, 4>}, {pipeline_mode = #tpu.pipeline_mode<synchronous>, transform_indices = @transform_5, window_bounds = array<i64: 1, 4>}, {pipeline_mode = #tpu.pipeline_mode<synchronous>, transform_indices = @transform_6, window_bounds = array<i64: 2, 4>}]} {
    %c0 = arith.constant 0 : index
    %c0_0 = arith.constant 0 : index
    %0 = vector.load %arg1[%c0, %c0_0] : memref<16x32xbf16, #tpu.memory_space<vmem>>, vector<16x32xbf16>
    %c0_1 = arith.constant 0 : index
    %c0_2 = arith.constant 0 : index
    %1 = vector.load %arg2[%c0_1, %c0_2] : memref<32x256xbf16, #tpu.memory_space<vmem>>, vector<32x256xbf16>
    %cst = arith.constant dense<0.000000e+00> : vector<16x256xf32>
    %2 = tpu.matmul %0, %1, %cst {dimension_numbers = #tpu.dot_dimension_numbers<[1], [0], [0], [1], [0, 0, 1, 1], [], []>} : vector<16x32xbf16>, vector<32x256xbf16>, vector<16x256xf32> -> vector<16x256xf32>
    %c0_3 = arith.constant 0 : index
    %c0_4 = arith.constant 0 : index
    %3 = vector.load %arg4[%c0_3, %c0_4] : memref<1x256xf32, #tpu.memory_space<vmem>>, vector<1x256xf32>
    %4 = vector.broadcast %3 : vector<1x256xf32> to vector<16x256xf32>
    %5 = arith.addf %2, %4 : vector<16x256xf32>
    %c0_5 = arith.constant 0 : index
    %c0_6 = arith.constant 0 : index
    %6 = vector.load %arg3[%c0_5, %c0_6] : memref<64x256xbf16, #tpu.memory_space<vmem>>, vector<64x256xbf16>
    %cst_7 = arith.constant 0.000000e+00 : f32
    %7 = vector.broadcast %cst_7 : f32 to vector<2x64xf32>
    %cst_8 = arith.constant 0.000000e+00 : f32
    %8 = vector.broadcast %cst_8 : f32 to vector<2x64xf32>
    %cst_9 = arith.constant 0.000000e+00 : f32
    %9 = vector.broadcast %cst_9 : f32 to vector<2x64xf32>
    %10 = vector.extract_strided_slice %5 {offsets = [0, 0], sizes = [2, 256], strides = [1, 1]} : vector<16x256xf32> to vector<2x256xf32>
    %11 = arith.truncf %7 : vector<2x64xf32> to vector<2x64xbf16>
    %cst_10 = arith.constant dense<0.000000e+00> : vector<2x256xf32>
    %12 = tpu.matmul %11, %6, %cst_10 {dimension_numbers = #tpu.dot_dimension_numbers<[1], [0], [0], [1], [0, 0, 1, 1], [], []>} : vector<2x64xbf16>, vector<64x256xbf16>, vector<2x256xf32> -> vector<2x256xf32>
    %13 = arith.addf %10, %12 : vector<2x256xf32>
    %14 = vector.extract_strided_slice %13 {offsets = [0, 0], sizes = [2, 192], strides = [1, 1]} : vector<2x256xf32> to vector<2x192xf32>
    %cst_11 = arith.constant 5.000000e-01 : f32
    %15 = vector.broadcast %cst_11 : f32 to vector<2x192xf32>
    %16 = arith.mulf %15, %14 : vector<2x192xf32>
    %17 = math.tanh %16 : vector<2x192xf32>
    %cst_12 = arith.constant 1.000000e+00 : f32
    %18 = vector.broadcast %cst_12 : f32 to vector<2x192xf32>
    %19 = arith.addf %17, %18 : vector<2x192xf32>
    %cst_13 = arith.constant 5.000000e-01 : f32
    %20 = vector.broadcast %cst_13 : f32 to vector<2x192xf32>
    %21 = arith.mulf %20, %19 : vector<2x192xf32>
    %22 = vector.extract_strided_slice %13 {offsets = [0, 192], sizes = [2, 64], strides = [1, 1]} : vector<2x256xf32> to vector<2x64xf32>
    %23 = math.tanh %22 : vector<2x64xf32>
    %24 = vector.extract_strided_slice %21 {offsets = [0, 0], sizes = [2, 64], strides = [1, 1]} : vector<2x192xf32> to vector<2x64xf32>
    %25 = vector.extract_strided_slice %21 {offsets = [0, 64], sizes = [2, 64], strides = [1, 1]} : vector<2x192xf32> to vector<2x64xf32>
    %26 = vector.extract_strided_slice %21 {offsets = [0, 128], sizes = [2, 64], strides = [1, 1]} : vector<2x192xf32> to vector<2x64xf32>
    %27 = arith.mulf %25, %8 : vector<2x64xf32>
    %28 = arith.mulf %24, %23 : vector<2x64xf32>
    %29 = arith.addf %27, %28 : vector<2x64xf32>
    %30 = math.tanh %29 : vector<2x64xf32>
    %31 = arith.mulf %26, %30 : vector<2x64xf32>
    %32 = arith.addf %9, %31 : vector<2x64xf32>
    %33 = vector.extract_strided_slice %5 {offsets = [2, 0], sizes = [2, 256], strides = [1, 1]} : vector<16x256xf32> to vector<2x256xf32>
    %34 = arith.truncf %31 : vector<2x64xf32> to vector<2x64xbf16>
    %cst_14 = arith.constant dense<0.000000e+00> : vector<2x256xf32>
    %35 = tpu.matmul %34, %6, %cst_14 {dimension_numbers = #tpu.dot_dimension_numbers<[1], [0], [0], [1], [0, 0, 1, 1], [], []>} : vector<2x64xbf16>, vector<64x256xbf16>, vector<2x256xf32> -> vector<2x256xf32>
    %36 = arith.addf %33, %35 : vector<2x256xf32>
    %37 = vector.extract_strided_slice %36 {offsets = [0, 0], sizes = [2, 192], strides = [1, 1]} : vector<2x256xf32> to vector<2x192xf32>
    %cst_15 = arith.constant 5.000000e-01 : f32
    %38 = vector.broadcast %cst_15 : f32 to vector<2x192xf32>
    %39 = arith.mulf %38, %37 : vector<2x192xf32>
    %40 = math.tanh %39 : vector<2x192xf32>
    %cst_16 = arith.constant 1.000000e+00 : f32
    %41 = vector.broadcast %cst_16 : f32 to vector<2x192xf32>
    %42 = arith.addf %40, %41 : vector<2x192xf32>
    %cst_17 = arith.constant 5.000000e-01 : f32
    %43 = vector.broadcast %cst_17 : f32 to vector<2x192xf32>
    %44 = arith.mulf %43, %42 : vector<2x192xf32>
    %45 = vector.extract_strided_slice %36 {offsets = [0, 192], sizes = [2, 64], strides = [1, 1]} : vector<2x256xf32> to vector<2x64xf32>
    %46 = math.tanh %45 : vector<2x64xf32>
    %47 = vector.extract_strided_slice %44 {offsets = [0, 0], sizes = [2, 64], strides = [1, 1]} : vector<2x192xf32> to vector<2x64xf32>
    %48 = vector.extract_strided_slice %44 {offsets = [0, 64], sizes = [2, 64], strides = [1, 1]} : vector<2x192xf32> to vector<2x64xf32>
    %49 = vector.extract_strided_slice %44 {offsets = [0, 128], sizes = [2, 64], strides = [1, 1]} : vector<2x192xf32> to vector<2x64xf32>
    %50 = arith.mulf %48, %29 : vector<2x64xf32>
    %51 = arith.mulf %47, %46 : vector<2x64xf32>
    %52 = arith.addf %50, %51 : vector<2x64xf32>
    %53 = math.tanh %52 : vector<2x64xf32>
    %54 = arith.mulf %49, %53 : vector<2x64xf32>
    %55 = arith.addf %32, %54 : vector<2x64xf32>
    %56 = vector.extract_strided_slice %5 {offsets = [4, 0], sizes = [2, 256], strides = [1, 1]} : vector<16x256xf32> to vector<2x256xf32>
    %57 = arith.truncf %54 : vector<2x64xf32> to vector<2x64xbf16>
    %cst_18 = arith.constant dense<0.000000e+00> : vector<2x256xf32>
    %58 = tpu.matmul %57, %6, %cst_18 {dimension_numbers = #tpu.dot_dimension_numbers<[1], [0], [0], [1], [0, 0, 1, 1], [], []>} : vector<2x64xbf16>, vector<64x256xbf16>, vector<2x256xf32> -> vector<2x256xf32>
    %59 = arith.addf %56, %58 : vector<2x256xf32>
    %60 = vector.extract_strided_slice %59 {offsets = [0, 0], sizes = [2, 192], strides = [1, 1]} : vector<2x256xf32> to vector<2x192xf32>
    %cst_19 = arith.constant 5.000000e-01 : f32
    %61 = vector.broadcast %cst_19 : f32 to vector<2x192xf32>
    %62 = arith.mulf %61, %60 : vector<2x192xf32>
    %63 = math.tanh %62 : vector<2x192xf32>
    %cst_20 = arith.constant 1.000000e+00 : f32
    %64 = vector.broadcast %cst_20 : f32 to vector<2x192xf32>
    %65 = arith.addf %63, %64 : vector<2x192xf32>
    %cst_21 = arith.constant 5.000000e-01 : f32
    %66 = vector.broadcast %cst_21 : f32 to vector<2x192xf32>
    %67 = arith.mulf %66, %65 : vector<2x192xf32>
    %68 = vector.extract_strided_slice %59 {offsets = [0, 192], sizes = [2, 64], strides = [1, 1]} : vector<2x256xf32> to vector<2x64xf32>
    %69 = math.tanh %68 : vector<2x64xf32>
    %70 = vector.extract_strided_slice %67 {offsets = [0, 0], sizes = [2, 64], strides = [1, 1]} : vector<2x192xf32> to vector<2x64xf32>
    %71 = vector.extract_strided_slice %67 {offsets = [0, 64], sizes = [2, 64], strides = [1, 1]} : vector<2x192xf32> to vector<2x64xf32>
    %72 = vector.extract_strided_slice %67 {offsets = [0, 128], sizes = [2, 64], strides = [1, 1]} : vector<2x192xf32> to vector<2x64xf32>
    %73 = arith.mulf %71, %52 : vector<2x64xf32>
    %74 = arith.mulf %70, %69 : vector<2x64xf32>
    %75 = arith.addf %73, %74 : vector<2x64xf32>
    %76 = math.tanh %75 : vector<2x64xf32>
    %77 = arith.mulf %72, %76 : vector<2x64xf32>
    %78 = arith.addf %55, %77 : vector<2x64xf32>
    %79 = vector.extract_strided_slice %5 {offsets = [6, 0], sizes = [2, 256], strides = [1, 1]} : vector<16x256xf32> to vector<2x256xf32>
    %80 = arith.truncf %77 : vector<2x64xf32> to vector<2x64xbf16>
    %cst_22 = arith.constant dense<0.000000e+00> : vector<2x256xf32>
    %81 = tpu.matmul %80, %6, %cst_22 {dimension_numbers = #tpu.dot_dimension_numbers<[1], [0], [0], [1], [0, 0, 1, 1], [], []>} : vector<2x64xbf16>, vector<64x256xbf16>, vector<2x256xf32> -> vector<2x256xf32>
    %82 = arith.addf %79, %81 : vector<2x256xf32>
    %83 = vector.extract_strided_slice %82 {offsets = [0, 0], sizes = [2, 192], strides = [1, 1]} : vector<2x256xf32> to vector<2x192xf32>
    %cst_23 = arith.constant 5.000000e-01 : f32
    %84 = vector.broadcast %cst_23 : f32 to vector<2x192xf32>
    %85 = arith.mulf %84, %83 : vector<2x192xf32>
    %86 = math.tanh %85 : vector<2x192xf32>
    %cst_24 = arith.constant 1.000000e+00 : f32
    %87 = vector.broadcast %cst_24 : f32 to vector<2x192xf32>
    %88 = arith.addf %86, %87 : vector<2x192xf32>
    %cst_25 = arith.constant 5.000000e-01 : f32
    %89 = vector.broadcast %cst_25 : f32 to vector<2x192xf32>
    %90 = arith.mulf %89, %88 : vector<2x192xf32>
    %91 = vector.extract_strided_slice %82 {offsets = [0, 192], sizes = [2, 64], strides = [1, 1]} : vector<2x256xf32> to vector<2x64xf32>
    %92 = math.tanh %91 : vector<2x64xf32>
    %93 = vector.extract_strided_slice %90 {offsets = [0, 0], sizes = [2, 64], strides = [1, 1]} : vector<2x192xf32> to vector<2x64xf32>
    %94 = vector.extract_strided_slice %90 {offsets = [0, 64], sizes = [2, 64], strides = [1, 1]} : vector<2x192xf32> to vector<2x64xf32>
    %95 = vector.extract_strided_slice %90 {offsets = [0, 128], sizes = [2, 64], strides = [1, 1]} : vector<2x192xf32> to vector<2x64xf32>
    %96 = arith.mulf %94, %75 : vector<2x64xf32>
    %97 = arith.mulf %93, %92 : vector<2x64xf32>
    %98 = arith.addf %96, %97 : vector<2x64xf32>
    %99 = math.tanh %98 : vector<2x64xf32>
    %100 = arith.mulf %95, %99 : vector<2x64xf32>
    %101 = arith.addf %78, %100 : vector<2x64xf32>
    %102 = vector.extract_strided_slice %5 {offsets = [8, 0], sizes = [2, 256], strides = [1, 1]} : vector<16x256xf32> to vector<2x256xf32>
    %103 = arith.truncf %100 : vector<2x64xf32> to vector<2x64xbf16>
    %cst_26 = arith.constant dense<0.000000e+00> : vector<2x256xf32>
    %104 = tpu.matmul %103, %6, %cst_26 {dimension_numbers = #tpu.dot_dimension_numbers<[1], [0], [0], [1], [0, 0, 1, 1], [], []>} : vector<2x64xbf16>, vector<64x256xbf16>, vector<2x256xf32> -> vector<2x256xf32>
    %105 = arith.addf %102, %104 : vector<2x256xf32>
    %106 = vector.extract_strided_slice %105 {offsets = [0, 0], sizes = [2, 192], strides = [1, 1]} : vector<2x256xf32> to vector<2x192xf32>
    %cst_27 = arith.constant 5.000000e-01 : f32
    %107 = vector.broadcast %cst_27 : f32 to vector<2x192xf32>
    %108 = arith.mulf %107, %106 : vector<2x192xf32>
    %109 = math.tanh %108 : vector<2x192xf32>
    %cst_28 = arith.constant 1.000000e+00 : f32
    %110 = vector.broadcast %cst_28 : f32 to vector<2x192xf32>
    %111 = arith.addf %109, %110 : vector<2x192xf32>
    %cst_29 = arith.constant 5.000000e-01 : f32
    %112 = vector.broadcast %cst_29 : f32 to vector<2x192xf32>
    %113 = arith.mulf %112, %111 : vector<2x192xf32>
    %114 = vector.extract_strided_slice %105 {offsets = [0, 192], sizes = [2, 64], strides = [1, 1]} : vector<2x256xf32> to vector<2x64xf32>
    %115 = math.tanh %114 : vector<2x64xf32>
    %116 = vector.extract_strided_slice %113 {offsets = [0, 0], sizes = [2, 64], strides = [1, 1]} : vector<2x192xf32> to vector<2x64xf32>
    %117 = vector.extract_strided_slice %113 {offsets = [0, 64], sizes = [2, 64], strides = [1, 1]} : vector<2x192xf32> to vector<2x64xf32>
    %118 = vector.extract_strided_slice %113 {offsets = [0, 128], sizes = [2, 64], strides = [1, 1]} : vector<2x192xf32> to vector<2x64xf32>
    %119 = arith.mulf %117, %98 : vector<2x64xf32>
    %120 = arith.mulf %116, %115 : vector<2x64xf32>
    %121 = arith.addf %119, %120 : vector<2x64xf32>
    %122 = math.tanh %121 : vector<2x64xf32>
    %123 = arith.mulf %118, %122 : vector<2x64xf32>
    %124 = arith.addf %101, %123 : vector<2x64xf32>
    %125 = vector.extract_strided_slice %5 {offsets = [10, 0], sizes = [2, 256], strides = [1, 1]} : vector<16x256xf32> to vector<2x256xf32>
    %126 = arith.truncf %123 : vector<2x64xf32> to vector<2x64xbf16>
    %cst_30 = arith.constant dense<0.000000e+00> : vector<2x256xf32>
    %127 = tpu.matmul %126, %6, %cst_30 {dimension_numbers = #tpu.dot_dimension_numbers<[1], [0], [0], [1], [0, 0, 1, 1], [], []>} : vector<2x64xbf16>, vector<64x256xbf16>, vector<2x256xf32> -> vector<2x256xf32>
    %128 = arith.addf %125, %127 : vector<2x256xf32>
    %129 = vector.extract_strided_slice %128 {offsets = [0, 0], sizes = [2, 192], strides = [1, 1]} : vector<2x256xf32> to vector<2x192xf32>
    %cst_31 = arith.constant 5.000000e-01 : f32
    %130 = vector.broadcast %cst_31 : f32 to vector<2x192xf32>
    %131 = arith.mulf %130, %129 : vector<2x192xf32>
    %132 = math.tanh %131 : vector<2x192xf32>
    %cst_32 = arith.constant 1.000000e+00 : f32
    %133 = vector.broadcast %cst_32 : f32 to vector<2x192xf32>
    %134 = arith.addf %132, %133 : vector<2x192xf32>
    %cst_33 = arith.constant 5.000000e-01 : f32
    %135 = vector.broadcast %cst_33 : f32 to vector<2x192xf32>
    %136 = arith.mulf %135, %134 : vector<2x192xf32>
    %137 = vector.extract_strided_slice %128 {offsets = [0, 192], sizes = [2, 64], strides = [1, 1]} : vector<2x256xf32> to vector<2x64xf32>
    %138 = math.tanh %137 : vector<2x64xf32>
    %139 = vector.extract_strided_slice %136 {offsets = [0, 0], sizes = [2, 64], strides = [1, 1]} : vector<2x192xf32> to vector<2x64xf32>
    %140 = vector.extract_strided_slice %136 {offsets = [0, 64], sizes = [2, 64], strides = [1, 1]} : vector<2x192xf32> to vector<2x64xf32>
    %141 = vector.extract_strided_slice %136 {offsets = [0, 128], sizes = [2, 64], strides = [1, 1]} : vector<2x192xf32> to vector<2x64xf32>
    %142 = arith.mulf %140, %121 : vector<2x64xf32>
    %143 = arith.mulf %139, %138 : vector<2x64xf32>
    %144 = arith.addf %142, %143 : vector<2x64xf32>
    %145 = math.tanh %144 : vector<2x64xf32>
    %146 = arith.mulf %141, %145 : vector<2x64xf32>
    %147 = arith.addf %124, %146 : vector<2x64xf32>
    %148 = vector.extract_strided_slice %5 {offsets = [12, 0], sizes = [2, 256], strides = [1, 1]} : vector<16x256xf32> to vector<2x256xf32>
    %149 = arith.truncf %146 : vector<2x64xf32> to vector<2x64xbf16>
    %cst_34 = arith.constant dense<0.000000e+00> : vector<2x256xf32>
    %150 = tpu.matmul %149, %6, %cst_34 {dimension_numbers = #tpu.dot_dimension_numbers<[1], [0], [0], [1], [0, 0, 1, 1], [], []>} : vector<2x64xbf16>, vector<64x256xbf16>, vector<2x256xf32> -> vector<2x256xf32>
    %151 = arith.addf %148, %150 : vector<2x256xf32>
    %152 = vector.extract_strided_slice %151 {offsets = [0, 0], sizes = [2, 192], strides = [1, 1]} : vector<2x256xf32> to vector<2x192xf32>
    %cst_35 = arith.constant 5.000000e-01 : f32
    %153 = vector.broadcast %cst_35 : f32 to vector<2x192xf32>
    %154 = arith.mulf %153, %152 : vector<2x192xf32>
    %155 = math.tanh %154 : vector<2x192xf32>
    %cst_36 = arith.constant 1.000000e+00 : f32
    %156 = vector.broadcast %cst_36 : f32 to vector<2x192xf32>
    %157 = arith.addf %155, %156 : vector<2x192xf32>
    %cst_37 = arith.constant 5.000000e-01 : f32
    %158 = vector.broadcast %cst_37 : f32 to vector<2x192xf32>
    %159 = arith.mulf %158, %157 : vector<2x192xf32>
    %160 = vector.extract_strided_slice %151 {offsets = [0, 192], sizes = [2, 64], strides = [1, 1]} : vector<2x256xf32> to vector<2x64xf32>
    %161 = math.tanh %160 : vector<2x64xf32>
    %162 = vector.extract_strided_slice %159 {offsets = [0, 0], sizes = [2, 64], strides = [1, 1]} : vector<2x192xf32> to vector<2x64xf32>
    %163 = vector.extract_strided_slice %159 {offsets = [0, 64], sizes = [2, 64], strides = [1, 1]} : vector<2x192xf32> to vector<2x64xf32>
    %164 = vector.extract_strided_slice %159 {offsets = [0, 128], sizes = [2, 64], strides = [1, 1]} : vector<2x192xf32> to vector<2x64xf32>
    %165 = arith.mulf %163, %144 : vector<2x64xf32>
    %166 = arith.mulf %162, %161 : vector<2x64xf32>
    %167 = arith.addf %165, %166 : vector<2x64xf32>
    %168 = math.tanh %167 : vector<2x64xf32>
    %169 = arith.mulf %164, %168 : vector<2x64xf32>
    %170 = arith.addf %147, %169 : vector<2x64xf32>
    %171 = vector.extract_strided_slice %5 {offsets = [14, 0], sizes = [2, 256], strides = [1, 1]} : vector<16x256xf32> to vector<2x256xf32>
    %172 = arith.truncf %169 : vector<2x64xf32> to vector<2x64xbf16>
    %cst_38 = arith.constant dense<0.000000e+00> : vector<2x256xf32>
    %173 = tpu.matmul %172, %6, %cst_38 {dimension_numbers = #tpu.dot_dimension_numbers<[1], [0], [0], [1], [0, 0, 1, 1], [], []>} : vector<2x64xbf16>, vector<64x256xbf16>, vector<2x256xf32> -> vector<2x256xf32>
    %174 = arith.addf %171, %173 : vector<2x256xf32>
    %175 = vector.extract_strided_slice %174 {offsets = [0, 0], sizes = [2, 192], strides = [1, 1]} : vector<2x256xf32> to vector<2x192xf32>
    %cst_39 = arith.constant 5.000000e-01 : f32
    %176 = vector.broadcast %cst_39 : f32 to vector<2x192xf32>
    %177 = arith.mulf %176, %175 : vector<2x192xf32>
    %178 = math.tanh %177 : vector<2x192xf32>
    %cst_40 = arith.constant 1.000000e+00 : f32
    %179 = vector.broadcast %cst_40 : f32 to vector<2x192xf32>
    %180 = arith.addf %178, %179 : vector<2x192xf32>
    %cst_41 = arith.constant 5.000000e-01 : f32
    %181 = vector.broadcast %cst_41 : f32 to vector<2x192xf32>
    %182 = arith.mulf %181, %180 : vector<2x192xf32>
    %183 = vector.extract_strided_slice %174 {offsets = [0, 192], sizes = [2, 64], strides = [1, 1]} : vector<2x256xf32> to vector<2x64xf32>
    %184 = math.tanh %183 : vector<2x64xf32>
    %185 = vector.extract_strided_slice %182 {offsets = [0, 0], sizes = [2, 64], strides = [1, 1]} : vector<2x192xf32> to vector<2x64xf32>
    %186 = vector.extract_strided_slice %182 {offsets = [0, 64], sizes = [2, 64], strides = [1, 1]} : vector<2x192xf32> to vector<2x64xf32>
    %187 = vector.extract_strided_slice %182 {offsets = [0, 128], sizes = [2, 64], strides = [1, 1]} : vector<2x192xf32> to vector<2x64xf32>
    %188 = arith.mulf %186, %167 : vector<2x64xf32>
    %189 = arith.mulf %185, %184 : vector<2x64xf32>
    %190 = arith.addf %188, %189 : vector<2x64xf32>
    %191 = math.tanh %190 : vector<2x64xf32>
    %192 = arith.mulf %187, %191 : vector<2x64xf32>
    %193 = arith.addf %170, %192 : vector<2x64xf32>
    %cst_42 = arith.constant 1.250000e-01 : f32
    %194 = vector.broadcast %cst_42 : f32 to vector<2x64xf32>
    %195 = arith.mulf %193, %194 : vector<2x64xf32>
    %c0_43 = arith.constant 0 : index
    %c0_44 = arith.constant 0 : index
    %196 = vector.load %arg5[%c0_43, %c0_44] : memref<64x4xf32, #tpu.memory_space<vmem>>, vector<64x4xf32>
    %cst_45 = arith.constant dense<0.000000e+00> : vector<2x4xf32>
    %197 = tpu.matmul %195, %196, %cst_45 {dimension_numbers = #tpu.dot_dimension_numbers<[1], [0], [0], [1], [0, 0, 1, 1], [], []>} : vector<2x64xf32>, vector<64x4xf32>, vector<2x4xf32> -> vector<2x4xf32>
    %c0_46 = arith.constant 0 : index
    %c0_47 = arith.constant 0 : index
    %198 = vector.load %arg6[%c0_46, %c0_47] : memref<1x4xf32, #tpu.memory_space<vmem>>, vector<1x4xf32>
    %199 = vector.broadcast %198 : vector<1x4xf32> to vector<2x4xf32>
    %200 = arith.addf %197, %199 : vector<2x4xf32>
    %201 = arith.negf %200 : vector<2x4xf32>
    %202 = math.exp %201 : vector<2x4xf32>
    %cst_48 = arith.constant 1.000000e+00 : f32
    %203 = vector.broadcast %cst_48 : f32 to vector<2x4xf32>
    %204 = arith.addf %203, %202 : vector<2x4xf32>
    %205 = arith.divf %203, %204 : vector<2x4xf32>
    %c0_49 = arith.constant 0 : index
    %c0_50 = arith.constant 0 : index
    %206 = vector.load %arg7[%c0_49, %c0_50] : memref<2x4xf32, #tpu.memory_space<vmem>>, vector<2x4xf32>
    tpu.vector_store %arg7[%c0_49, %c0_50], %205 {strides = array<i32>} : memref<2x4xf32, #tpu.memory_space<vmem>>, vector<2x4xf32>,
    return
  }
  func.func @transform_0(%arg0: i32) -> (i32, i32) {
    %c0_i32 = arith.constant 0 : i32
    %c0_i32_0 = arith.constant 0 : i32
    %c0_i32_1 = arith.constant 0 : i32
    return %c0_i32, %c0_i32_0 : i32, i32
  }
  func.func @transform_1(%arg0: i32) -> (i32, i32) {
    %c0_i32 = arith.constant 0 : i32
    %c0_i32_0 = arith.constant 0 : i32
    %c0_i32_1 = arith.constant 0 : i32
    return %c0_i32, %c0_i32_0 : i32, i32
  }
  func.func @transform_2(%arg0: i32) -> (i32, i32) {
    %c0_i32 = arith.constant 0 : i32
    %c0_i32_0 = arith.constant 0 : i32
    %c0_i32_1 = arith.constant 0 : i32
    return %c0_i32, %c0_i32_0 : i32, i32
  }
  func.func @transform_3(%arg0: i32) -> (i32, i32) {
    %c0_i32 = arith.constant 0 : i32
    %c0_i32_0 = arith.constant 0 : i32
    %c0_i32_1 = arith.constant 0 : i32
    return %c0_i32, %c0_i32_0 : i32, i32
  }
  func.func @transform_4(%arg0: i32) -> (i32, i32) {
    %c0_i32 = arith.constant 0 : i32
    %c0_i32_0 = arith.constant 0 : i32
    %c0_i32_1 = arith.constant 0 : i32
    return %c0_i32, %c0_i32_0 : i32, i32
  }
  func.func @transform_5(%arg0: i32) -> (i32, i32) {
    %c0_i32 = arith.constant 0 : i32
    %c0_i32_0 = arith.constant 0 : i32
    %c0_i32_1 = arith.constant 0 : i32
    return %c0_i32, %c0_i32_0 : i32, i32
  }
  func.func @transform_6(%arg0: i32) -> (i32, i32) {
    %c0_i32 = arith.constant 0 : i32
    %c0_i32_0 = arith.constant 0 : i32
    %c0_i32_1 = arith.constant 0 : i32
    return %c0_i32, %c0_i32_0 : i32, i32
  }
}

</mosaic_0001>

<llo_original>
// kernel: tpu_custom_call.1
$region0: #{tpu_custom_call.1}
  #allocation0 [shape = 'u32[]', space=smem, size = 0x4, offset = 0x4, fixed_abs, tag = 'smem constant byte address 0x4 - core index']
  #allocation1 [shape = 'u32[144,128]{1,0:T(1,128)}', space=vmem, size = 0x12000, scoped, tag = 'internal scratch']
  %s0 = inlined_call_operand.vmem [shape: bf16[16,32], index: 0, kind: input, shape index: {}]
  %s1 = inlined_call_operand.hbm [shape: bf16[32,256], index: 1, kind: input, shape index: {}]
  %s2 = inlined_call_operand.vmem [shape: bf16[64,256], index: 2, kind: input, shape index: {}]
  %s3 = inlined_call_operand.vmem [shape: f32[1,256], index: 3, kind: input, shape index: {}]
  %s4 = inlined_call_operand.vmem [shape: f32[64,4], index: 4, kind: input, shape index: {}]
  %s5 = inlined_call_operand.vmem [shape: f32[1,4], index: 5, kind: input, shape index: {}]
  %s6 = inlined_call_operand.hbm [shape: f32[2,4], index: 6, kind: output, shape index: {}]
  %s7 = sld [smem:[#allocation0]]
  $region38: #{tpu_custom_call.1} parent=0
    _
  %s9 = ssub.s32 1, %s7
  %s10 = scalar_select 0, %s9, %s7
  $region1: #{tpu_custom_call.1} parent=0
    #allocation2 [shape = 'u8[16384]{0}', space=vmem, size = 0x4000, scoped, tag = 'input window, operand 1, single buffered']
    #allocation3 [shape = 's32[1]{0}', space=sflag, size = 0x4, scoped, tag = 'scoped memory for tpu_custom_call.1']
    #allocation4 [shape = 's32[1]{0}', space=sflag, size = 0x4, scoped, tag = 'scoped memory for tpu_custom_call.1']
    #allocation5 [shape = 'u8[1024]{0}', space=vmem, size = 0x400, scoped, tag = 'output window, operand 0, single buffered']
    %11 = vsyncpa [#allocation3], 0
    %12 = vsyncpa [#allocation4], 0
    // Predicated region
    $region2: #{tpu_custom_call.1} parent=1 // pred_check
      _
    $region3: #{tpu_custom_call.1} parent=1 // pred_check_branch
      %14 = sbr.rel (0) target = $region5
    $region4: #{tpu_custom_call.1} parent=1 // pred_region
      _
    $region5: #{tpu_custom_call.1} parent=1 // pred_fallthru
      _
    // Predicated region
    $region6: #{tpu_custom_call.1} parent=1 // pred_check
      _
    $region7: #{tpu_custom_call.1} parent=1 // pred_check_branch
      %16 = sbr.rel (0) target = $region9
    $region8: #{tpu_custom_call.1} parent=1 // pred_region
      %s18 = ssub.s32 512, 512
      %19 = vsyncadd [#allocation3], %s18
      %s20 = sshll.u32 [#allocation2], 4
      %s21 = int_to_ptr.vmem [resolvable:$true] %s20
      %26 = dma.hbm_to_vmem [thread:$0]  %s1, 512, %s21, [#allocation3], 128, 128, 8
    $region9: #{tpu_custom_call.1} parent=1 // pred_fallthru
      _
    // Predicated region
    $region10: #{tpu_custom_call.1} parent=1 // pred_check
      _
    $region11: #{tpu_custom_call.1} parent=1 // pred_check_branch
      %28 = sbr.rel (0) target = $region13
    $region12: #{tpu_custom_call.1} parent=1 // pred_region
      _
    $region13: #{tpu_custom_call.1} parent=1 // pred_fallthru
      _
    // Predicated region
    $region14: #{tpu_custom_call.1} parent=1 // pred_check
      _
    $region15: #{tpu_custom_call.1} parent=1 // pred_check_branch
      %30 = sbr.rel (0) target = $region17
    $region16: #{tpu_custom_call.1} parent=1 // pred_region
      _
    $region17: #{tpu_custom_call.1} parent=1 // pred_fallthru
      _
    // Predicated region
    $region18: #{tpu_custom_call.1} parent=1 // pred_check
      _
    $region19: #{tpu_custom_call.1} parent=1 // pred_check_branch
      %32 = sbr.rel (0) target = $region21
    $region20: #{tpu_custom_call.1} parent=1 // pred_region
      _
    $region21: #{tpu_custom_call.1} parent=1 // pred_fallthru
      _
    // Predicated region
    $region22: #{tpu_custom_call.1} parent=1 // pred_check
      _
    $region23: #{tpu_custom_call.1} parent=1 // pred_check_branch
      %34 = sbr.rel (0) target = $region25
    $region24: #{tpu_custom_call.1} parent=1 // pred_region
      _
    $region25: #{tpu_custom_call.1} parent=1 // pred_fallthru
      _
    // Predicated region
    $region26: #{tpu_custom_call.1} parent=1 // pred_check
      _
    $region27: #{tpu_custom_call.1} parent=1 // pred_check_branch
      %36 = sbr.rel (0) target = $region29
    $region28: #{tpu_custom_call.1} parent=1 // pred_region
      %37 = dma.done [#allocation3], 512
    $region29: #{tpu_custom_call.1} parent=1 // pred_fallthru
      _
    %v39 = vld [vmem:[%s0] sm:$0xf]
    %v40 = vld [vmem:[%s0 + $0x4] sm:$0xf]
    %v41 = vld [vmem:[#allocation2] sm:$0xff]
    %v42 = vld [vmem:[#allocation2 + $0x8] sm:$0xff]
    %v43 = vld [vmem:[#allocation2 + $0x10] sm:$0xff]
    %v44 = vld [vmem:[#allocation2 + $0x18] sm:$0xff]
    %v45 = vld [vmem:[%s3] sm:$0x3]
    %v47 = vlaneseq
    %v48 = vshrl.u32 %v47, 7
    %v49 = vsub.s32 0, %v48
    %v50 = vrot.slane %v45, %v49
    %v51 = vlaneseq
    %v52 = vshrl.u32 %v51, 7
    %v53 = vsub.s32 1, %v52
    %v54 = vrot.slane %v45, %v53
    %v59 = vunpack.c.l.b16 %v39
    %v60 = vunpack.c.l.b16 %v40
    %v61 = vpack.c.b16 %v60, %v59
    %v66 = vunpack.c.l.b16 %v41
    %v67 = vunpack.c.h.b16 %v41
    %v68 = vunpack.c.l.b16 %v42
    %v69 = vunpack.c.h.b16 %v42
    %v70 = vunpack.c.l.b16 %v43
    %v71 = vunpack.c.h.b16 %v43
    %v72 = vunpack.c.l.b16 %v44
    %v73 = vunpack.c.h.b16 %v44
    %v74 = vpack.c.b16 %v68, %v66
    %v75 = vpack.c.b16 %v69, %v67
    %v76 = vpack.c.b16 %v72, %v70
    %v77 = vpack.c.b16 %v73, %v71
    %vm82 = vcmask 261120
    %v84 = vsel %vm82, %v61, 0
    %86 = vmatprep.subr.bf16.mxu0 %v75
    %87 = vmatpush1.bf16.msra.mxu0 %v74
    %88 = vmatprep.subr.bf16.mxu0 %v77
    %89 = vmatpush1.bf16.msra.mxu0 %v76
    %90 = vmatprep.subr.bf16.mxu0 0
    %91 = vmatpush1.bf16.msra.mxu0 0
    %92 = vmatprep.subr.bf16.mxu0 0
    %93 = vmatpush1.bf16.msra.mxu0 0
    %94 = vmatprep.subr.bf16.mxu0 0
    %95 = vmatpush1.bf16.msra.mxu0 0
    %96 = vmatprep.subr.bf16.mxu0 0
    %97 = vmatpush1.bf16.msra.mxu0 0
    %98 = vmatprep.subr.bf16.mxu0 0
    %99 = vmatpush1.bf16.msra.mxu0 0
    %100 = vmatprep.subr.bf16.mxu0 0
    %101 = vmatpush1.bf16.msra.mxu0 0
    %102 = vmatprep.subr.bf16.mxu0 0
    %103 = vmatpush1.bf16.msra.mxu0 0
    %104 = vmatprep.subr.bf16.mxu0 0
    %105 = vmatpush1.bf16.msra.mxu0 0
    %106 = vmatprep.subr.bf16.mxu0 0
    %107 = vmatpush1.bf16.msra.mxu0 0
    %108 = vmatprep.subr.bf16.mxu0 0
    %109 = vmatpush1.bf16.msra.mxu0 0
    %110 = vmatprep.subr.bf16.mxu0 0
    %111 = vmatpush1.bf16.msra.mxu0 0
    %112 = vmatprep.subr.bf16.mxu0 0
    %113 = vmatpush1.bf16.msra.mxu0 0
    %114 = vmatprep.subr.bf16.mxu0 0
    %115 = vmatpush1.bf16.msra.mxu0 0
    %116 = vmatprep.subr.bf16.mxu0 0
    %117 = vmatpush1.bf16.msra.mxu0 0
    %118 = vmatprep.mubr.bf16.mxu0 0
    %119 = vmatmul.mubr.bf16.gmra.mrb[0].mxu0 %v84
    %v120 = vpop.f32.mrb[0].mxu0
    %v121 = vadd.f32 %v50, %v120
    %v122 = vpop.f32.mrb[0].mxu0
    %v123 = vadd.f32 %v54, %v122
    %v124 = vpop.f32.mrb[0].mxu0
    %v125 = vadd.f32 %v50, %v124
    %v126 = vpop.f32.mrb[0].mxu0
    %v127 = vadd.f32 %v54, %v126
    %128 = vdwg.mxu0
    %v129 = vld [vmem:[%s2] sm:$0xff]
    %v130 = vld [vmem:[%s2 + $0x8] sm:$0xff]
    %v131 = vld [vmem:[%s2 + $0x10] sm:$0xff]
    %v132 = vld [vmem:[%s2 + $0x18] sm:$0xff]
    %v133 = vld [vmem:[%s2 + $0x20] sm:$0xff]
    %v134 = vld [vmem:[%s2 + $0x28] sm:$0xff]
    %v135 = vld [vmem:[%s2 + $0x30] sm:$0xff]
    %v136 = vld [vmem:[%s2 + $0x38] sm:$0xff]
    %v145 = vunpack.c.l.b16 %v129
    %v146 = vunpack.c.h.b16 %v129
    %v147 = vunpack.c.l.b16 %v130
    %v148 = vunpack.c.h.b16 %v130
    %v149 = vunpack.c.l.b16 %v131
    %v150 = vunpack.c.h.b16 %v131
    %v151 = vunpack.c.l.b16 %v132
    %v152 = vunpack.c.h.b16 %v132
    %v153 = vunpack.c.l.b16 %v133
    %v154 = vunpack.c.h.b16 %v133
    %v155 = vunpack.c.l.b16 %v134
    %v156 = vunpack.c.h.b16 %v134
    %v157 = vunpack.c.l.b16 %v135
    %v158 = vunpack.c.h.b16 %v135
    %v159 = vunpack.c.l.b16 %v136
    %v160 = vunpack.c.h.b16 %v136
    %v161 = vpack.c.b16 %v147, %v145
    %v162 = vpack.c.b16 %v148, %v146
    %v163 = vpack.c.b16 %v151, %v149
    %v164 = vpack.c.b16 %v152, %v150
    %v165 = vpack.c.b16 %v155, %v153
    %v166 = vpack.c.b16 %v156, %v154
    %v167 = vpack.c.b16 %v159, %v157
    %v168 = vpack.c.b16 %v160, %v158
    %vm177 = vcmask 523264
    %v179 = vsel %vm177, 0, 0
    %181 = vmatprep.subr.bf16.mxu0 %v162
    %182 = vmatpush1.bf16.msra.mxu0 %v161
    %183 = vmatprep.subr.bf16.mxu0 %v164
    %184 = vmatpush1.bf16.msra.mxu0 %v163
    %185 = vmatprep.subr.bf16.mxu0 %v166
    %186 = vmatpush1.bf16.msra.mxu0 %v165
    %187 = vmatprep.subr.bf16.mxu0 %v168
    %188 = vmatpush1.bf16.msra.mxu0 %v167
    %189 = vmatprep.subr.bf16.mxu0 0
    %190 = vmatpush1.bf16.msra.mxu0 0
    %191 = vmatprep.subr.bf16.mxu0 0
    %192 = vmatpush1.bf16.msra.mxu0 0
    %193 = vmatprep.subr.bf16.mxu0 0
    %194 = vmatpush1.bf16.msra.mxu0 0
    %195 = vmatprep.subr.bf16.mxu0 0
    %196 = vmatpush1.bf16.msra.mxu0 0
    %197 = vmatprep.subr.bf16.mxu0 0
    %198 = vmatpush1.bf16.msra.mxu0 0
    %199 = vmatprep.subr.bf16.mxu0 0
    %200 = vmatpush1.bf16.msra.mxu0 0
    %201 = vmatprep.subr.bf16.mxu0 0
    %202 = vmatpush1.bf16.msra.mxu0 0
    %203 = vmatprep.subr.bf16.mxu0 0
    %204 = vmatpush1.bf16.msra.mxu0 0
    %205 = vmatprep.subr.bf16.mxu0 0
    %206 = vmatpush1.bf16.msra.mxu0 0
    %207 = vmatprep.subr.bf16.mxu0 0
    %208 = vmatpush1.bf16.msra.mxu0 0
    %209 = vmatprep.subr.bf16.mxu0 0
    %210 = vmatpush1.bf16.msra.mxu0 0
    %211 = vmatprep.subr.bf16.mxu0 0
    %212 = vmatpush1.bf16.msra.mxu0 0
    %213 = vmatprep.mubr.bf16.mxu0 0
    %214 = vmatmul.mubr.bf16.gmra.mrb[0].mxu0 %v179
    %v215 = vpop.f32.mrb[0].mxu0
    %v216 = vadd.f32 0.0, %v215
    %v217 = vpop.f32.mrb[0].mxu0
    %v218 = vadd.f32 0.0, %v217
    %v219 = vpop.f32.mrb[0].mxu0
    %v220 = vpop.f32.mrb[0].mxu0
    %221 = vdwg.mxu0
    %v222 = vadd.f32 %v121, %v216
    %v223 = vadd.f32 %v123, %v218
    %v224 = vmul.f32 %v222, 0.5
    %v225 = vmul.f32 %v223, 0.5
    %v226 = vtanh.pop %v224
    %v227 = vtanh.pop %v225
    %v228 = vadd.f32 %v226, 1.0
    %v229 = vadd.f32 %v227, 1.0
    %v230 = vmul.f32 %v228, 0.5
    %v231 = vmul.f32 %v229, 0.5
    %v232 = vtanh.pop %v223
    %v233 = vmul.f32 %v230, 0.0
    %235 = vrot.lane.b32.xlu0 %v232, 64
    %v236 = vpop.permute.xlu0 %235
    %v238 = vmul.f32 %v230, %v236
    %240 = vrot.lane.b32.xlu0 %v238, 64
    %v241 = vpop.permute.xlu0 %240
    %v243 = vadd.f32 %v233, %v241
    %v244 = vtanh.pop %v243
    %246 = vrot.lane.b32.xlu0 %v244, 64
    %v247 = vpop.permute.xlu0 %246
    %v249 = vmul.f32 %v231, %v247
    %v250 = vadd.f32 %v249, 0.0
    %v251 = vpack.c.bf16 %v249, %v249
    %v253 = vsel %vm177, %v251, 0
    %255 = vmatprep.subr.bf16.mxu0 %v162
    %256 = vmatpush1.bf16.msra.mxu0 %v161
    %257 = vmatprep.subr.bf16.mxu0 %v164
    %258 = vmatpush1.bf16.msra.mxu0 %v163
    %259 = vmatprep.subr.bf16.mxu0 %v166
    %260 = vmatpush1.bf16.msra.mxu0 %v165
    %261 = vmatprep.subr.bf16.mxu0 %v168
    %262 = vmatpush1.bf16.msra.mxu0 %v167
    %263 = vmatprep.subr.bf16.mxu0 0
    %264 = vmatpush1.bf16.msra.mxu0 0
    %265 = vmatprep.subr.bf16.mxu0 0
    %266 = vmatpush1.bf16.msra.mxu0 0
    %267 = vmatprep.subr.bf16.mxu0 0
    %268 = vmatpush1.bf16.msra.mxu0 0
    %269 = vmatprep.subr.bf16.mxu0 0
    %270 = vmatpush1.bf16.msra.mxu0 0
    %271 = vmatprep.subr.bf16.mxu0 0
    %272 = vmatpush1.bf16.msra.mxu0 0
    %273 = vmatprep.subr.bf16.mxu0 0
    %274 = vmatpush1.bf16.msra.mxu0 0
    %275 = vmatprep.subr.bf16.mxu0 0
    %276 = vmatpush1.bf16.msra.mxu0 0
    %277 = vmatprep.subr.bf16.mxu0 0
    %278 = vmatpush1.bf16.msra.mxu0 0
    %279 = vmatprep.subr.bf16.mxu0 0
    %280 = vmatpush1.bf16.msra.mxu0 0
    %281 = vmatprep.subr.bf16.mxu0 0
    %282 = vmatpush1.bf16.msra.mxu0 0
    %283 = vmatprep.subr.bf16.mxu0 0
    %284 = vmatpush1.bf16.msra.mxu0 0
    %285 = vmatprep.subr.bf16.mxu0 0
    %286 = vmatpush1.bf16.msra.mxu0 0
    %287 = vmatprep.mubr.bf16.mxu0 0
    %288 = vmatmul.mubr.bf16.gmra.mrb[0].mxu0 %v253
    %v289 = vpop.f32.mrb[0].mxu0
    %v290 = vadd.f32 0.0, %v289
    %v291 = vpop.f32.mrb[0].mxu0
    %v292 = vadd.f32 0.0, %v291
    %v293 = vpop.f32.mrb[0].mxu0
    %v294 = vpop.f32.mrb[0].mxu0
    %295 = vdwg.mxu0
    %v298 = vrot.slane %v290, 6
    %v299 = vrot.slane %v292, 6
    %v302 = vadd.f32 %v121, %v298
    %v303 = vadd.f32 %v123, %v299
    %v304 = vmul.f32 %v302, 0.5
    %v305 = vmul.f32 %v303, 0.5
    %v306 = vtanh.pop %v304
    %v307 = vtanh.pop %v305
    %v308 = vadd.f32 %v306, 1.0
    %v309 = vadd.f32 %v307, 1.0
    %v310 = vmul.f32 %v308, 0.5
    %v311 = vmul.f32 %v309, 0.5
    %v312 = vtanh.pop %v303
    %v314 = vrot.slane %v243, 6
    %v316 = vmul.f32 %v310, %v314
    %318 = vrot.lane.b32.xlu0 %v312, 64
    %v319 = vpop.permute.xlu0 %318
    %v321 = vmul.f32 %v310, %v319
    %323 = vrot.lane.b32.xlu0 %v321, 64
    %v324 = vpop.permute.xlu0 %323
    %v326 = vadd.f32 %v316, %v324
    %v327 = vtanh.pop %v326
    %329 = vrot.lane.b32.xlu0 %v327, 64
    %v330 = vpop.permute.xlu0 %329
    %v332 = vmul.f32 %v311, %v330
    %v334 = vrot.slane %v332, 2
    %v336 = vadd.f32 %v250, %v334
    %v337 = vpack.c.bf16 %v332, %v332
    %v339 = vrot.slane %v337, 1
    %v341 = vsel %vm177, %v339, 0
    %343 = vmatprep.subr.bf16.mxu0 %v162
    %344 = vmatpush1.bf16.msra.mxu0 %v161
    %345 = vmatprep.subr.bf16.mxu0 %v164
    %346 = vmatpush1.bf16.msra.mxu0 %v163
    %347 = vmatprep.subr.bf16.mxu0 %v166
    %348 = vmatpush1.bf16.msra.mxu0 %v165
    %349 = vmatprep.subr.bf16.mxu0 %v168
    %350 = vmatpush1.bf16.msra.mxu0 %v167
    %351 = vmatprep.subr.bf16.mxu0 0
    %352 = vmatpush1.bf16.msra.mxu0 0
    %353 = vmatprep.subr.bf16.mxu0 0
    %354 = vmatpush1.bf16.msra.mxu0 0
    %355 = vmatprep.subr.bf16.mxu0 0
    %356 = vmatpush1.bf16.msra.mxu0 0
    %357 = vmatprep.subr.bf16.mxu0 0
    %358 = vmatpush1.bf16.msra.mxu0 0
    %359 = vmatprep.subr.bf16.mxu0 0
    %360 = vmatpush1.bf16.msra.mxu0 0
    %361 = vmatprep.subr.bf16.mxu0 0
    %362 = vmatpush1.bf16.msra.mxu0 0
    %363 = vmatprep.subr.bf16.mxu0 0
    %364 = vmatpush1.bf16.msra.mxu0 0
    %365 = vmatprep.subr.bf16.mxu0 0
    %366 = vmatpush1.bf16.msra.mxu0 0
    %367 = vmatprep.subr.bf16.mxu0 0
    %368 = vmatpush1.bf16.msra.mxu0 0
    %369 = vmatprep.subr.bf16.mxu0 0
    %370 = vmatpush1.bf16.msra.mxu0 0
    %371 = vmatprep.subr.bf16.mxu0 0
    %372 = vmatpush1.bf16.msra.mxu0 0
    %373 = vmatprep.subr.bf16.mxu0 0
    %374 = vmatpush1.bf16.msra.mxu0 0
    %375 = vmatprep.mubr.bf16.mxu0 0
    %376 = vmatmul.mubr.bf16.gmra.mrb[0].mxu0 %v341
    %v377 = vpop.f32.mrb[0].mxu0
    %v378 = vadd.f32 0.0, %v377
    %v379 = vpop.f32.mrb[0].mxu0
    %v380 = vadd.f32 0.0, %v379
    %v381 = vpop.f32.mrb[0].mxu0
    %v382 = vpop.f32.mrb[0].mxu0
    %383 = vdwg.mxu0
    %v386 = vrot.slane %v378, 4
    %v387 = vrot.slane %v380, 4
    %v390 = vadd.f32 %v121, %v386
    %v391 = vadd.f32 %v123, %v387
    %v392 = vmul.f32 %v390, 0.5
    %v393 = vmul.f32 %v391, 0.5
    %v394 = vtanh.pop %v392
    %v395 = vtanh.pop %v393
    %v396 = vadd.f32 %v394, 1.0
    %v397 = vadd.f32 %v395, 1.0
    %v398 = vmul.f32 %v396, 0.5
    %v399 = vmul.f32 %v397, 0.5
    %v400 = vtanh.pop %v391
    %v402 = vrot.slane %v326, 6
    %v404 = vmul.f32 %v398, %v402
    %406 = vrot.lane.b32.xlu0 %v400, 64
    %v407 = vpop.permute.xlu0 %406
    %v409 = vmul.f32 %v398, %v407
    %411 = vrot.lane.b32.xlu0 %v409, 64
    %v412 = vpop.permute.xlu0 %411
    %v414 = vadd.f32 %v404, %v412
    %v415 = vtanh.pop %v414
    %417 = vrot.lane.b32.xlu0 %v415, 64
    %v418 = vpop.permute.xlu0 %417
    %v420 = vmul.f32 %v399, %v418
    %v422 = vrot.slane %v420, 4
    %v424 = vadd.f32 %v336, %v422
    %v425 = vpack.c.bf16 %v420, %v420
    %v427 = vrot.slane %v425, 2
    %v429 = vsel %vm177, %v427, 0
    %431 = vmatprep.subr.bf16.mxu0 %v162
    %432 = vmatpush1.bf16.msra.mxu0 %v161
    %433 = vmatprep.subr.bf16.mxu0 %v164
    %434 = vmatpush1.bf16.msra.mxu0 %v163
    %435 = vmatprep.subr.bf16.mxu0 %v166
    %436 = vmatpush1.bf16.msra.mxu0 %v165
    %437 = vmatprep.subr.bf16.mxu0 %v168
    %438 = vmatpush1.bf16.msra.mxu0 %v167
    %439 = vmatprep.subr.bf16.mxu0 0
    %440 = vmatpush1.bf16.msra.mxu0 0
    %441 = vmatprep.subr.bf16.mxu0 0
    %442 = vmatpush1.bf16.msra.mxu0 0
    %443 = vmatprep.subr.bf16.mxu0 0
    %444 = vmatpush1.bf16.msra.mxu0 0
    %445 = vmatprep.subr.bf16.mxu0 0
    %446 = vmatpush1.bf16.msra.mxu0 0
    %447 = vmatprep.subr.bf16.mxu0 0
    %448 = vmatpush1.bf16.msra.mxu0 0
    %449 = vmatprep.subr.bf16.mxu0 0
    %450 = vmatpush1.bf16.msra.mxu0 0
    %451 = vmatprep.subr.bf16.mxu0 0
    %452 = vmatpush1.bf16.msra.mxu0 0
    %453 = vmatprep.subr.bf16.mxu0 0
    %454 = vmatpush1.bf16.msra.mxu0 0
    %455 = vmatprep.subr.bf16.mxu0 0
    %456 = vmatpush1.bf16.msra.mxu0 0
    %457 = vmatprep.subr.bf16.mxu0 0
    %458 = vmatpush1.bf16.msra.mxu0 0
    %459 = vmatprep.subr.bf16.mxu0 0
    %460 = vmatpush1.bf16.msra.mxu0 0
    %461 = vmatprep.subr.bf16.mxu0 0
    %462 = vmatpush1.bf16.msra.mxu0 0
    %463 = vmatprep.mubr.bf16.mxu0 0
    %464 = vmatmul.mubr.bf16.gmra.mrb[0].mxu0 %v429
    %v465 = vpop.f32.mrb[0].mxu0
    %v466 = vadd.f32 0.0, %v465
    %v467 = vpop.f32.mrb[0].mxu0
    %v468 = vadd.f32 0.0, %v467
    %v469 = vpop.f32.mrb[0].mxu0
    %v470 = vpop.f32.mrb[0].mxu0
    %471 = vdwg.mxu0
    %v474 = vrot.slane %v466, 2
    %v475 = vrot.slane %v468, 2
    %v478 = vadd.f32 %v121, %v474
    %v479 = vadd.f32 %v123, %v475
    %v480 = vmul.f32 %v478, 0.5
    %v481 = vmul.f32 %v479, 0.5
    %v482 = vtanh.pop %v480
    %v483 = vtanh.pop %v481
    %v484 = vadd.f32 %v482, 1.0
    %v485 = vadd.f32 %v483, 1.0
    %v486 = vmul.f32 %v484, 0.5
    %v487 = vmul.f32 %v485, 0.5
    %v488 = vtanh.pop %v479
    %v490 = vrot.slane %v414, 6
    %v492 = vmul.f32 %v486, %v490
    %494 = vrot.lane.b32.xlu0 %v488, 64
    %v495 = vpop.permute.xlu0 %494
    %v497 = vmul.f32 %v486, %v495
    %499 = vrot.lane.b32.xlu0 %v497, 64
    %v500 = vpop.permute.xlu0 %499
    %v502 = vadd.f32 %v492, %v500
    %v503 = vtanh.pop %v502
    %505 = vrot.lane.b32.xlu0 %v503, 64
    %v506 = vpop.permute.xlu0 %505
    %v508 = vmul.f32 %v487, %v506
    %v510 = vrot.slane %v508, 6
    %v512 = vadd.f32 %v424, %v510
    %v513 = vpack.c.bf16 %v508, %v508
    %v515 = vrot.slane %v513, 3
    %v517 = vsel %vm177, %v515, 0
    %519 = vmatprep.subr.bf16.mxu0 %v162
    %520 = vmatpush1.bf16.msra.mxu0 %v161
    %521 = vmatprep.subr.bf16.mxu0 %v164
    %522 = vmatpush1.bf16.msra.mxu0 %v163
    %523 = vmatprep.subr.bf16.mxu0 %v166
    %524 = vmatpush1.bf16.msra.mxu0 %v165
    %525 = vmatprep.subr.bf16.mxu0 %v168
    %526 = vmatpush1.bf16.msra.mxu0 %v167
    %527 = vmatprep.subr.bf16.mxu0 0
    %528 = vmatpush1.bf16.msra.mxu0 0
    %529 = vmatprep.subr.bf16.mxu0 0
    %530 = vmatpush1.bf16.msra.mxu0 0
    %531 = vmatprep.subr.bf16.mxu0 0
    %532 = vmatpush1.bf16.msra.mxu0 0
    %533 = vmatprep.subr.bf16.mxu0 0
    %534 = vmatpush1.bf16.msra.mxu0 0
    %535 = vmatprep.subr.bf16.mxu0 0
    %536 = vmatpush1.bf16.msra.mxu0 0
    %537 = vmatprep.subr.bf16.mxu0 0
    %538 = vmatpush1.bf16.msra.mxu0 0
    %539 = vmatprep.subr.bf16.mxu0 0
    %540 = vmatpush1.bf16.msra.mxu0 0
    %541 = vmatprep.subr.bf16.mxu0 0
    %542 = vmatpush1.bf16.msra.mxu0 0
    %543 = vmatprep.subr.bf16.mxu0 0
    %544 = vmatpush1.bf16.msra.mxu0 0
    %545 = vmatprep.subr.bf16.mxu0 0
    %546 = vmatpush1.bf16.msra.mxu0 0
    %547 = vmatprep.subr.bf16.mxu0 0
    %548 = vmatpush1.bf16.msra.mxu0 0
    %549 = vmatprep.subr.bf16.mxu0 0
    %550 = vmatpush1.bf16.msra.mxu0 0
    %551 = vmatprep.mubr.bf16.mxu0 0
    %552 = vmatmul.mubr.bf16.gmra.mrb[0].mxu0 %v517
    %v553 = vpop.f32.mrb[0].mxu0
    %v554 = vadd.f32 0.0, %v553
    %v555 = vpop.f32.mrb[0].mxu0
    %v556 = vadd.f32 0.0, %v555
    %v557 = vpop.f32.mrb[0].mxu0
    %v558 = vpop.f32.mrb[0].mxu0
    %559 = vdwg.mxu0
    %v560 = vadd.f32 %v125, %v554
    %v561 = vadd.f32 %v127, %v556
    %v562 = vmul.f32 %v560, 0.5
    %v563 = vmul.f32 %v561, 0.5
    %v564 = vtanh.pop %v562
    %v565 = vtanh.pop %v563
    %v566 = vadd.f32 %v564, 1.0
    %v567 = vadd.f32 %v565, 1.0
    %v568 = vmul.f32 %v566, 0.5
    %v569 = vmul.f32 %v567, 0.5
    %v570 = vtanh.pop %v561
    %v572 = vrot.slane %v502, 6
    %v574 = vmul.f32 %v568, %v572
    %576 = vrot.lane.b32.xlu0 %v570, 64
    %v577 = vpop.permute.xlu0 %576
    %v579 = vmul.f32 %v568, %v577
    %581 = vrot.lane.b32.xlu0 %v579, 64
    %v582 = vpop.permute.xlu0 %581
    %v584 = vadd.f32 %v574, %v582
    %v585 = vtanh.pop %v584
    %587 = vrot.lane.b32.xlu0 %v585, 64
    %v588 = vpop.permute.xlu0 %587
    %v590 = vmul.f32 %v569, %v588
    %v591 = vadd.f32 %v512, %v590
    %v592 = vpack.c.bf16 %v590, %v590
    %v594 = vsel %vm177, %v592, 0
    %596 = vmatprep.subr.bf16.mxu0 %v162
    %597 = vmatpush1.bf16.msra.mxu0 %v161
    %598 = vmatprep.subr.bf16.mxu0 %v164
    %599 = vmatpush1.bf16.msra.mxu0 %v163
    %600 = vmatprep.subr.bf16.mxu0 %v166
    %601 = vmatpush1.bf16.msra.mxu0 %v165
    %602 = vmatprep.subr.bf16.mxu0 %v168
    %603 = vmatpush1.bf16.msra.mxu0 %v167
    %604 = vmatprep.subr.bf16.mxu0 0
    %605 = vmatpush1.bf16.msra.mxu0 0
    %606 = vmatprep.subr.bf16.mxu0 0
    %607 = vmatpush1.bf16.msra.mxu0 0
    %608 = vmatprep.subr.bf16.mxu0 0
    %609 = vmatpush1.bf16.msra.mxu0 0
    %610 = vmatprep.subr.bf16.mxu0 0
    %611 = vmatpush1.bf16.msra.mxu0 0
    %612 = vmatprep.subr.bf16.mxu0 0
    %613 = vmatpush1.bf16.msra.mxu0 0
    %614 = vmatprep.subr.bf16.mxu0 0
    %615 = vmatpush1.bf16.msra.mxu0 0
    %616 = vmatprep.subr.bf16.mxu0 0
    %617 = vmatpush1.bf16.msra.mxu0 0
    %618 = vmatprep.subr.bf16.mxu0 0
    %619 = vmatpush1.bf16.msra.mxu0 0
    %620 = vmatprep.subr.bf16.mxu0 0
    %621 = vmatpush1.bf16.msra.mxu0 0
    %622 = vmatprep.subr.bf16.mxu0 0
    %623 = vmatpush1.bf16.msra.mxu0 0
    %624 = vmatprep.subr.bf16.mxu0 0
    %625 = vmatpush1.bf16.msra.mxu0 0
    %626 = vmatprep.subr.bf16.mxu0 0
    %627 = vmatpush1.bf16.msra.mxu0 0
    %628 = vmatprep.mubr.bf16.mxu0 0
    %629 = vmatmul.mubr.bf16.gmra.mrb[0].mxu0 %v594
    %v630 = vpop.f32.mrb[0].mxu0
    %v631 = vadd.f32 0.0, %v630
    %v632 = vpop.f32.mrb[0].mxu0
    %v633 = vadd.f32 0.0, %v632
    %v634 = vpop.f32.mrb[0].mxu0
    %v635 = vpop.f32.mrb[0].mxu0
    %636 = vdwg.mxu0
    %v639 = vrot.slane %v631, 6
    %v640 = vrot.slane %v633, 6
    %v643 = vadd.f32 %v125, %v639
    %v644 = vadd.f32 %v127, %v640
    %v645 = vmul.f32 %v643, 0.5
    %v646 = vmul.f32 %v644, 0.5
    %v647 = vtanh.pop %v645
    %v648 = vtanh.pop %v646
    %v649 = vadd.f32 %v647, 1.0
    %v650 = vadd.f32 %v648, 1.0
    %v651 = vmul.f32 %v649, 0.5
    %v652 = vmul.f32 %v650, 0.5
    %v653 = vtanh.pop %v644
    %v655 = vrot.slane %v584, 6
    %v657 = vmul.f32 %v651, %v655
    %659 = vrot.lane.b32.xlu0 %v653, 64
    %v660 = vpop.permute.xlu0 %659
    %v662 = vmul.f32 %v651, %v660
    %664 = vrot.lane.b32.xlu0 %v662, 64
    %v665 = vpop.permute.xlu0 %664
    %v667 = vadd.f32 %v657, %v665
    %v668 = vtanh.pop %v667
    %670 = vrot.lane.b32.xlu0 %v668, 64
    %v671 = vpop.permute.xlu0 %670
    %v673 = vmul.f32 %v652, %v671
    %v675 = vrot.slane %v673, 2
    %v677 = vadd.f32 %v591, %v675
    %v678 = vpack.c.bf16 %v673, %v673
    %v680 = vrot.slane %v678, 1
    %v682 = vsel %vm177, %v680, 0
    %684 = vmatprep.subr.bf16.mxu0 %v162
    %685 = vmatpush1.bf16.msra.mxu0 %v161
    %686 = vmatprep.subr.bf16.mxu0 %v164
    %687 = vmatpush1.bf16.msra.mxu0 %v163
    %688 = vmatprep.subr.bf16.mxu0 %v166
    %689 = vmatpush1.bf16.msra.mxu0 %v165
    %690 = vmatprep.subr.bf16.mxu0 %v168
    %691 = vmatpush1.bf16.msra.mxu0 %v167
    %692 = vmatprep.subr.bf16.mxu0 0
    %693 = vmatpush1.bf16.msra.mxu0 0
    %694 = vmatprep.subr.bf16.mxu0 0
    %695 = vmatpush1.bf16.msra.mxu0 0
    %696 = vmatprep.subr.bf16.mxu0 0
    %697 = vmatpush1.bf16.msra.mxu0 0
    %698 = vmatprep.subr.bf16.mxu0 0
    %699 = vmatpush1.bf16.msra.mxu0 0
    %700 = vmatprep.subr.bf16.mxu0 0
    %701 = vmatpush1.bf16.msra.mxu0 0
    %702 = vmatprep.subr.bf16.mxu0 0
    %703 = vmatpush1.bf16.msra.mxu0 0
    %704 = vmatprep.subr.bf16.mxu0 0
    %705 = vmatpush1.bf16.msra.mxu0 0
    %706 = vmatprep.subr.bf16.mxu0 0
    %707 = vmatpush1.bf16.msra.mxu0 0
    %708 = vmatprep.subr.bf16.mxu0 0
    %709 = vmatpush1.bf16.msra.mxu0 0
    %710 = vmatprep.subr.bf16.mxu0 0
    %711 = vmatpush1.bf16.msra.mxu0 0
    %712 = vmatprep.subr.bf16.mxu0 0
    %713 = vmatpush1.bf16.msra.mxu0 0
    %714 = vmatprep.subr.bf16.mxu0 0
    %715 = vmatpush1.bf16.msra.mxu0 0
    %716 = vmatprep.mubr.bf16.mxu0 0
    %717 = vmatmul.mubr.bf16.gmra.mrb[0].mxu0 %v682
    %v718 = vpop.f32.mrb[0].mxu0
    %v719 = vadd.f32 0.0, %v718
    %v720 = vpop.f32.mrb[0].mxu0
    %v721 = vadd.f32 0.0, %v720
    %v722 = vpop.f32.mrb[0].mxu0
    %v723 = vpop.f32.mrb[0].mxu0
    %724 = vdwg.mxu0
    %v727 = vrot.slane %v719, 4
    %v728 = vrot.slane %v721, 4
    %v731 = vadd.f32 %v125, %v727
    %v732 = vadd.f32 %v127, %v728
    %v733 = vmul.f32 %v731, 0.5
    %v734 = vmul.f32 %v732, 0.5
    %v735 = vtanh.pop %v733
    %v736 = vtanh.pop %v734
    %v737 = vadd.f32 %v735, 1.0
    %v738 = vadd.f32 %v736, 1.0
    %v739 = vmul.f32 %v737, 0.5
    %v740 = vmul.f32 %v738, 0.5
    %v741 = vtanh.pop %v732
    %v743 = vrot.slane %v667, 6
    %v745 = vmul.f32 %v739, %v743
    %747 = vrot.lane.b32.xlu0 %v741, 64
    %v748 = vpop.permute.xlu0 %747
    %v750 = vmul.f32 %v739, %v748
    %752 = vrot.lane.b32.xlu0 %v750, 64
    %v753 = vpop.permute.xlu0 %752
    %v755 = vadd.f32 %v745, %v753
    %v756 = vtanh.pop %v755
    %758 = vrot.lane.b32.xlu0 %v756, 64
    %v759 = vpop.permute.xlu0 %758
    %v761 = vmul.f32 %v740, %v759
    %v763 = vrot.slane %v761, 4
    %v765 = vadd.f32 %v677, %v763
    %v766 = vpack.c.bf16 %v761, %v761
    %v768 = vrot.slane %v766, 2
    %v770 = vsel %vm177, %v768, 0
    %772 = vmatprep.subr.bf16.mxu0 %v162
    %773 = vmatpush1.bf16.msra.mxu0 %v161
    %774 = vmatprep.subr.bf16.mxu0 %v164
    %775 = vmatpush1.bf16.msra.mxu0 %v163
    %776 = vmatprep.subr.bf16.mxu0 %v166
    %777 = vmatpush1.bf16.msra.mxu0 %v165
    %778 = vmatprep.subr.bf16.mxu0 %v168
    %779 = vmatpush1.bf16.msra.mxu0 %v167
    %780 = vmatprep.subr.bf16.mxu0 0
    %781 = vmatpush1.bf16.msra.mxu0 0
    %782 = vmatprep.subr.bf16.mxu0 0
    %783 = vmatpush1.bf16.msra.mxu0 0
    %784 = vmatprep.subr.bf16.mxu0 0
    %785 = vmatpush1.bf16.msra.mxu0 0
    %786 = vmatprep.subr.bf16.mxu0 0
    %787 = vmatpush1.bf16.msra.mxu0 0
    %788 = vmatprep.subr.bf16.mxu0 0
    %789 = vmatpush1.bf16.msra.mxu0 0
    %790 = vmatprep.subr.bf16.mxu0 0
    %791 = vmatpush1.bf16.msra.mxu0 0
    %792 = vmatprep.subr.bf16.mxu0 0
    %793 = vmatpush1.bf16.msra.mxu0 0
    %794 = vmatprep.subr.bf16.mxu0 0
    %795 = vmatpush1.bf16.msra.mxu0 0
    %796 = vmatprep.subr.bf16.mxu0 0
    %797 = vmatpush1.bf16.msra.mxu0 0
    %798 = vmatprep.subr.bf16.mxu0 0
    %799 = vmatpush1.bf16.msra.mxu0 0
    %800 = vmatprep.subr.bf16.mxu0 0
    %801 = vmatpush1.bf16.msra.mxu0 0
    %802 = vmatprep.subr.bf16.mxu0 0
    %803 = vmatpush1.bf16.msra.mxu0 0
    %804 = vmatprep.mubr.bf16.mxu0 0
    %805 = vmatmul.mubr.bf16.gmra.mrb[0].mxu0 %v770
    %v806 = vpop.f32.mrb[0].mxu0
    %v807 = vadd.f32 0.0, %v806
    %v808 = vpop.f32.mrb[0].mxu0
    %v809 = vadd.f32 0.0, %v808
    %v810 = vpop.f32.mrb[0].mxu0
    %v811 = vpop.f32.mrb[0].mxu0
    %812 = vdwg.mxu0
    %v815 = vrot.slane %v807, 2
    %v816 = vrot.slane %v809, 2
    %v819 = vadd.f32 %v125, %v815
    %v820 = vadd.f32 %v127, %v816
    %v821 = vmul.f32 %v819, 0.5
    %v822 = vmul.f32 %v820, 0.5
    %v823 = vtanh.pop %v821
    %v824 = vtanh.pop %v822
    %v825 = vadd.f32 %v823, 1.0
    %v826 = vadd.f32 %v824, 1.0
    %v827 = vmul.f32 %v825, 0.5
    %v828 = vmul.f32 %v826, 0.5
    %v829 = vtanh.pop %v820
    %v831 = vrot.slane %v755, 6
    %v833 = vmul.f32 %v827, %v831
    %835 = vrot.lane.b32.xlu0 %v829, 64
    %v836 = vpop.permute.xlu0 %835
    %v838 = vmul.f32 %v827, %v836
    %840 = vrot.lane.b32.xlu0 %v838, 64
    %v841 = vpop.permute.xlu0 %840
    %v843 = vadd.f32 %v833, %v841
    %v844 = vtanh.pop %v843
    %846 = vrot.lane.b32.xlu0 %v844, 64
    %v847 = vpop.permute.xlu0 %846
    %v849 = vmul.f32 %v828, %v847
    %v851 = vrot.slane %v849, 6
    %v853 = vadd.f32 %v765, %v851
    %v854 = vmul.f32 %v853, 0.125
    %v855 = vld [vmem:[%s4] sm:$0xff]
    %v856 = vld [vmem:[%s4 + $0x8] sm:$0xff]
    %v857 = vld [vmem:[%s4 + $0x10] sm:$0xff]
    %v858 = vld [vmem:[%s4 + $0x18] sm:$0xff]
    %v859 = vld [vmem:[%s4 + $0x20] sm:$0xff]
    %v860 = vld [vmem:[%s4 + $0x28] sm:$0xff]
    %v861 = vld [vmem:[%s4 + $0x30] sm:$0xff]
    %v862 = vld [vmem:[%s4 + $0x38] sm:$0xff]
    %v863 = vld [vmem:[%s5] sm:$0x1]
    %v865 = vlaneseq
    %v866 = vshrl.u32 %v865, 7
    %v867 = vsub.s32 0, %v866
    %v868 = vrot.slane %v863, %v867
    %v871 = vsel %vm177, %v854, 0
    %873 = vmatprep.subr.mxu0 0.0
    %874 = vmatpush1.msra.mxu0 %v855
    %875 = vmatprep.subr.mxu0 0.0
    %876 = vmatpush1.msra.mxu0 %v856
    %877 = vmatprep.subr.mxu0 0.0
    %878 = vmatpush1.msra.mxu0 %v857
    %879 = vmatprep.subr.mxu0 0.0
    %880 = vmatpush1.msra.mxu0 %v858
    %881 = vmatprep.subr.mxu0 0.0
    %882 = vmatpush1.msra.mxu0 %v859
    %883 = vmatprep.subr.mxu0 0.0
    %884 = vmatpush1.msra.mxu0 %v860
    %885 = vmatprep.subr.mxu0 0.0
    %886 = vmatpush1.msra.mxu0 %v861
    %887 = vmatprep.subr.mxu0 0.0
    %888 = vmatpush1.msra.mxu0 %v862
    %889 = vmatprep.subr.mxu0 0.0
    %890 = vmatpush1.msra.mxu0 0.0
    %891 = vmatprep.subr.mxu0 0.0
    %892 = vmatpush1.msra.mxu0 0.0
    %893 = vmatprep.subr.mxu0 0.0
    %894 = vmatpush1.msra.mxu0 0.0
    %895 = vmatprep.subr.mxu0 0.0
    %896 = vmatpush1.msra.mxu0 0.0
    %897 = vmatprep.subr.mxu0 0.0
    %898 = vmatpush1.msra.mxu0 0.0
    %899 = vmatprep.subr.mxu0 0.0
    %900 = vmatpush1.msra.mxu0 0.0
    %901 = vmatprep.subr.mxu0 0.0
    %902 = vmatpush1.msra.mxu0 0.0
    %903 = vmatprep.subr.mxu0 0.0
    %904 = vmatpush1.msra.mxu0 0.0
    %905 = vmatprep.subr.mxu0 0.0
    %906 = vmatpush1.msra.mxu0 0.0
    %907 = vmatprep.subr.mxu0 0.0
    %908 = vmatpush1.msra.mxu0 0.0
    %909 = vmatprep.subr.mxu0 0.0
    %910 = vmatpush1.msra.mxu0 0.0
    %911 = vmatprep.subr.mxu0 0.0
    %912 = vmatpush1.msra.mxu0 0.0
    %913 = vmatprep.subr.mxu0 0.0
    %914 = vmatpush1.msra.mxu0 0.0
    %915 = vmatprep.subr.mxu0 0.0
    %916 = vmatpush1.msra.mxu0 0.0
    %917 = vmatprep.subr.mxu0 0.0
    %918 = vmatpush1.msra.mxu0 0.0
    %919 = vmatprep.subr.mxu0 0.0
    %920 = vmatpush1.msra.mxu0 0.0
    %921 = vmatprep.subr.mxu0 0.0
    %922 = vmatpush1.msra.mxu0 0.0
    %923 = vmatprep.subr.mxu0 0.0
    %924 = vmatpush1.msra.mxu0 0.0
    %925 = vmatprep.subr.mxu0 0.0
    %926 = vmatpush1.msra.mxu0 0.0
    %927 = vmatprep.subr.mxu0 0.0
    %928 = vmatpush1.msra.mxu0 0.0
    %929 = vmatprep.subr.mxu0 0.0
    %930 = vmatpush1.msra.mxu0 0.0
    %931 = vmatprep.subr.mxu0 0.0
    %932 = vmatpush1.msra.mxu0 0.0
    %933 = vmatprep.subr.mxu0 0.0
    %934 = vmatpush1.msra.mxu0 0.0
    %935 = vmatprep.subr.mxu0 0.0
    %936 = vmatpush1.msra.mxu0 0.0
    %937 = vmatprep.mubr.f32.mxu0 0.0
    %938 = vmatmul.mubr.f32.gmra.mrb[0].mxu0 %v871
    %v939 = vpop.f32.mrb[0].mxu0
    %v940 = vadd.f32 %v868, %v939
    %v941 = vpop.f32.mrb[0].mxu0
    %942 = vdwg.mxu0
    %v943 = vxor.u32 %v940, 2147483648
    %v944 = vmul.f32 %v943, 1.442695
    %v945 = vpow.pop %v944
    %v946 = vadd.f32 %v945, 1.0
    %v947 = vrcp.pop %v946
    %v948 = vmul.f32 1.0, %v947
    %vm949 = vcmask 25600
    %950 = vst.msk [vmem:[#allocation5] sm:$0x3] %vm949, %v948
    // Predicated region
    $region30: #{tpu_custom_call.1} parent=1 // pred_check
      _
    $region31: #{tpu_custom_call.1} parent=1 // pred_check_branch
      %952 = sbr.rel (0) target = $region33
    $region32: #{tpu_custom_call.1} parent=1 // pred_region
      %s954 = ssub.s32 32, 32
      %955 = vsyncadd [#allocation4], %s954
      %s957 = sshll.u32 [#allocation5], 4
      %s958 = int_to_ptr.vmem [resolvable:$true] %s957
      %960 = dma.vmem_to_hbm [thread:$0]  %s958, 32, %s6, [#allocation4]
    $region33: #{tpu_custom_call.1} parent=1 // pred_fallthru
      _
    // Predicated region
    $region34: #{tpu_custom_call.1} parent=1 // pred_check
      _
    $region35: #{tpu_custom_call.1} parent=1 // pred_check_branch
      %962 = sbr.rel (0) target = $region37
    $region36: #{tpu_custom_call.1} parent=1 // pred_region
      %963 = dma.done [#allocation4], 32
    $region37: #{tpu_custom_call.1} parent=1 // pred_fallthru
      _
    %964 = vsyncpa [#allocation3], 1
    %965 = vsyncpa [#allocation4], 1

</llo_original>
